<compile_context>
chip_gen: v6e
topology: v6e:2x2x1
jax: 0.10.0
libtpu: 0.0.40
codegen_flags: <defaults>
</compile_context>

<pallas_src>
import jax
import jax.numpy as jnp
import numpy as np
from jax.experimental import pallas as pl
from jax.experimental.pallas import tpu as pltpu

IN_FEATURES = 77
OUT_FEATURES = 512


def _clip2sg_kernel(x_ref, wt_ref, b_ref, o_ref):
    # x_ref : (TM, 77)   input rows (f32 in HBM; cast to bf16 in-VMEM for MXU rate)
    # wt_ref: (77, 512)  W^T, stored bf16 at init, resident across the grid
    # b_ref : (1, 512)   bias row (f32)
    # o_ref : (TM, 512)  output rows (lane-dense 512-wide stores)
    xb = x_ref[...].astype(jnp.bfloat16)
    acc = jnp.dot(xb, wt_ref[...], preferred_element_type=jnp.float32)
    z = acc + b_ref[...]
    # sigmoid(z) = 1 / (1 + exp(-z)); exp + approx reciprocal both go to the EUP
    # slot, keeping the epilogue off the VALU path (matters most on v5e).
    sig = pl.reciprocal(1.0 + jnp.exp(-z), approx=True)
    o_ref[...] = sig.astype(o_ref.dtype)


def init_params(w, b, *, param_dtype=jnp.bfloat16):
    """One-time parameter prep, hoisted out of the per-call forward path.

    w: (512, 77) PyTorch nn.Linear layout -> W^T (77, 512) in param_dtype (bf16).
    b: (512,) -> (1, 512) f32 (tiny; kept full precision for the bias add).
    """
    return jnp.transpose(w).astype(param_dtype), b.reshape(1, -1).astype(jnp.float32)


def _pick_tm(B, tm_target):
    """Largest multiple of 256 <= tm_target with >= 2 grid steps (v7x megacore)."""
    tm = min(int(tm_target), -(-B // 2))     # ceil(B/2) keeps grid length >= 2
    tm = max(256, (tm // 256) * 256)
    return tm


def clip2sg_forward(x, w_t, b2, *, tm=2048, out_dtype=jnp.float32):
    """x: (B,77), w_t: (77,512) bf16 (pre-transposed at init), b2: (1,512) f32."""
    B, K = x.shape
    Kw, N = w_t.shape
    assert K == IN_FEATURES and Kw == IN_FEATURES and N == OUT_FEATURES
    assert b2.shape == (1, N)

    out_itemsize = np.dtype(out_dtype).itemsize
    cost = pl.CostEstimate(
        flops=2 * B * K * N,
        transcendentals=2 * B * N,  # exp + reciprocal per output element
        bytes_accessed=(x.size * x.dtype.itemsize
                        + w_t.size * w_t.dtype.itemsize
                        + b2.size * b2.dtype.itemsize
                        + B * N * out_itemsize),
    )

    if B <= 256:
        # Small batch: the whole problem is one block / one grid step.
        # TODO(synk): for latency-critical serving at tiny B, fuse this into the
        # producing kernel (or leave it to XLA to fuse with neighbors); the fixed
        # custom-call + prologue/epilogue cost dominates at this size.
        return pl.pallas_call(
            _clip2sg_kernel,
            out_shape=jax.ShapeDtypeStruct((B, N), out_dtype),
            grid_spec=pl.GridSpec(
                grid=(1,),
                in_specs=[
                    pl.BlockSpec((B, K), lambda i: (0, 0)),
                    pl.BlockSpec((K, N), lambda i: (0, 0)),
                    pl.BlockSpec((1, N), lambda i: (0, 0)),
                ],
                out_specs=pl.BlockSpec((B, N), lambda i: (0, 0)),
            ),
            cost_estimate=cost,
            compiler_params=pltpu.CompilerParams(
                dimension_semantics=("arbitrary",),
            ),
        )(x, w_t, b2)

    # Large batch: tile over rows; W^T and bias stay resident (constant block
    # index).  Batch axis is "parallel" (megacore-shardable on v7x).  Partial
    # tail block is handled by Pallas masking, so no padding is required.
    tm = _pick_tm(B, tm)
    grid_len = pl.cdiv(B, tm)

    # VMEM budget: double-buffered x/out tiles + resident (padded) W^T + slack.
    # Only set an explicit limit when we would exceed v5e's 16 MiB default.
    est_vmem = (2 * tm * 128 * x.dtype.itemsize        # x tile, K padded to 128 lanes
                + 2 * tm * N * out_itemsize            # output tile
                + 2 * 128 * N * w_t.dtype.itemsize     # W^T (sublane-padded)
                + (1 << 20))                           # headroom
    cp_kwargs = dict(dimension_semantics=("parallel",))
    if est_vmem > (12 << 20):
        cp_kwargs["vmem_limit_bytes"] = int(min(est_vmem, 48 << 20))

    return pl.pallas_call(
        _clip2sg_kernel,
        out_shape=jax.ShapeDtypeStruct((B, N), out_dtype),
        grid_spec=pl.GridSpec(
            grid=(grid_len,),
            in_specs=[
                pl.BlockSpec((tm, K), lambda i: (i, 0)),
                pl.BlockSpec((K, N), lambda i: (0, 0)),
                pl.BlockSpec((1, N), lambda i: (0, 0)),
            ],
            out_specs=pl.BlockSpec((tm, N), lambda i: (i, 0)),
        ),
        cost_estimate=cost,
        compiler_params=pltpu.CompilerParams(**cp_kwargs),
    )(x, w_t, b2)


if __name__ == "__main__":
    key = jax.random.PRNGKey(0)
    kx, kw, kb, kx2 = jax.random.split(key, 4)

    # Deterministic init mimicking nn.Linear default U[-1/sqrt(K), 1/sqrt(K)].
    bound = 1.0 / (IN_FEATURES ** 0.5)
    w = jax.random.uniform(kw, (OUT_FEATURES, IN_FEATURES),
                           minval=-bound, maxval=bound, dtype=jnp.float32)
    b = jax.random.uniform(kb, (OUT_FEATURES,),
                           minval=-bound, maxval=bound, dtype=jnp.float32)

    # One-time layout/dtype prep (hoisted out of the per-call forward path).
    w_t, b2 = init_params(w, b)

    # --- small-batch path: single block, single grid step ---
    B = 8
    x = jax.random.normal(kx, (B, IN_FEATURES), dtype=jnp.float32)
    out = jax.block_until_ready(clip2sg_forward(x, w_t, b2))
    ref = jax.nn.sigmoid(x @ w.T + b)
    assert out.shape == (B, OUT_FEATURES) and out.dtype == jnp.float32
    assert jnp.allclose(out, ref, atol=1e-2), (
        f"mismatch (small-batch): max err {float(jnp.max(jnp.abs(out - ref)))}")

    # --- batch-tiled path with a partial tail block (exercises cdiv grid) ---
    B2 = 640
    x2 = jax.random.normal(kx2, (B2, IN_FEATURES), dtype=jnp.float32)
    out2 = jax.block_until_ready(clip2sg_forward(x2, w_t, b2, tm=256))
    ref2 = jax.nn.sigmoid(x2 @ w.T + b)
    assert out2.shape == (B2, OUT_FEATURES)
    assert jnp.allclose(out2, ref2, atol=1e-2), (
        f"mismatch (batch-tiled): max err {float(jnp.max(jnp.abs(out2 - ref2)))}")

    print("KERNEL_OK")
</pallas_src>

<mosaic_0001>
module attributes {stable_mosaic.version = 11 : i64} {
  func.func @_clip2sg_kernel(%arg0: i32, %arg1: memref<8x77xf32, #tpu.memory_space<vmem>>, %arg2: memref<77x512xbf16, #tpu.memory_space<vmem>>, %arg3: memref<1x512xf32, #tpu.memory_space<vmem>>, %arg4: memref<8x512xf32, #tpu.memory_space<vmem>>) attributes {dimension_semantics = [#tpu.dimension_semantics<arbitrary>], iteration_bounds = array<i64: 1>, scalar_prefetch = 0 : i64, scratch_operands = 0 : i64, tpu.core_type = #tpu.core_type<tc>, window_params = [{pipeline_mode = #tpu.pipeline_mode<synchronous>, transform_indices = @transform_0, window_bounds = array<i64: 8, 77>}, {pipeline_mode = #tpu.pipeline_mode<synchronous>, transform_indices = @transform_1, window_bounds = array<i64: 77, 512>}, {pipeline_mode = #tpu.pipeline_mode<synchronous>, transform_indices = @transform_2, window_bounds = array<i64: 1, 512>}, {pipeline_mode = #tpu.pipeline_mode<synchronous>, transform_indices = @transform_3, window_bounds = array<i64: 8, 512>}]} {
    %c0 = arith.constant 0 : index
    %c0_0 = arith.constant 0 : index
    %0 = vector.load %arg1[%c0, %c0_0] : memref<8x77xf32, #tpu.memory_space<vmem>>, vector<8x77xf32>
    %1 = arith.truncf %0 : vector<8x77xf32> to vector<8x77xbf16>
    %c0_1 = arith.constant 0 : index
    %c0_2 = arith.constant 0 : index
    %2 = vector.load %arg2[%c0_1, %c0_2] : memref<77x512xbf16, #tpu.memory_space<vmem>>, vector<77x512xbf16>
    %cst = arith.constant dense<0.000000e+00> : vector<8x512xf32>
    %3 = tpu.matmul %1, %2, %cst {dimension_numbers = #tpu.dot_dimension_numbers<[1], [0], [0], [1], [0, 0, 1, 1], [], []>} : vector<8x77xbf16>, vector<77x512xbf16>, vector<8x512xf32> -> vector<8x512xf32>
    %c0_3 = arith.constant 0 : index
    %c0_4 = arith.constant 0 : index
    %4 = vector.load %arg3[%c0_3, %c0_4] : memref<1x512xf32, #tpu.memory_space<vmem>>, vector<1x512xf32>
    %5 = vector.broadcast %4 : vector<1x512xf32> to vector<8x512xf32>
    %6 = arith.addf %3, %5 : vector<8x512xf32>
    %cst_5 = arith.constant 0.000000e+00 : f32
    %7 = vector.broadcast %cst_5 : f32 to vector<8x512xf32>
    %8 = arith.subf %7, %6 : vector<8x512xf32>
    %9 = math.exp %8 : vector<8x512xf32>
    %cst_6 = arith.constant 1.000000e+00 : f32
    %10 = vector.broadcast %cst_6 : f32 to vector<8x512xf32>
    %11 = arith.addf %10, %9 : vector<8x512xf32>
    %12 = tpu.reciprocal %11 {approx = true} : vector<8x512xf32> -> vector<8x512xf32>
    %c0_7 = arith.constant 0 : index
    %c0_8 = arith.constant 0 : index
    %13 = vector.load %arg4[%c0_7, %c0_8] : memref<8x512xf32, #tpu.memory_space<vmem>>, vector<8x512xf32>
    tpu.vector_store %arg4[%c0_7, %c0_8], %12 {strides = array<i32>} : memref<8x512xf32, #tpu.memory_space<vmem>>, vector<8x512xf32>,
    return
  }
  func.func @transform_0(%arg0: i32) -> (i32, i32) {
    %c0_i32 = arith.constant 0 : i32
    %c0_i32_0 = arith.constant 0 : i32
    %c0_i32_1 = arith.constant 0 : i32
    return %c0_i32, %c0_i32_0 : i32, i32
  }
  func.func @transform_1(%arg0: i32) -> (i32, i32) {
    %c0_i32 = arith.constant 0 : i32
    %c0_i32_0 = arith.constant 0 : i32
    %c0_i32_1 = arith.constant 0 : i32
    return %c0_i32, %c0_i32_0 : i32, i32
  }
  func.func @transform_2(%arg0: i32) -> (i32, i32) {
    %c0_i32 = arith.constant 0 : i32
    %c0_i32_0 = arith.constant 0 : i32
    %c0_i32_1 = arith.constant 0 : i32
    return %c0_i32, %c0_i32_0 : i32, i32
  }
  func.func @transform_3(%arg0: i32) -> (i32, i32) {
    %c0_i32 = arith.constant 0 : i32
    %c0_i32_0 = arith.constant 0 : i32
    %c0_i32_1 = arith.constant 0 : i32
    return %c0_i32, %c0_i32_0 : i32, i32
  }
}

</mosaic_0001>

<llo_original>
// kernel: tpu_custom_call.1
$region0: #{tpu_custom_call.1}
  #allocation0 [shape = 'u32[]', space=smem, size = 0x4, offset = 0x4, fixed_abs, tag = 'smem constant byte address 0x4 - core index']
  #allocation1 [shape = 'u32[144,128]{1,0:T(1,128)}', space=vmem, size = 0x12000, scoped, tag = 'internal scratch']
  %s0 = inlined_call_operand.hbm [shape: f32[8,77], index: 0, kind: input, shape index: {}]
  %s1 = inlined_call_operand.hbm [shape: bf16[77,512], index: 1, kind: input, shape index: {}]
  %s2 = inlined_call_operand.hbm [shape: f32[1,512], index: 2, kind: input, shape index: {}]
  %s3 = inlined_call_operand.hbm [shape: f32[8,512], index: 3, kind: output, shape index: {}]
  %s4 = sld [smem:[#allocation0]]
  $region34: #{tpu_custom_call.1} parent=0
    _
  %s6 = ssub.s32 1, %s4
  %s7 = scalar_select 0, %s6, %s4
  $region1: #{tpu_custom_call.1} parent=0
    #allocation2 [shape = 'u8[4096]{0}', space=vmem, size = 0x1000, scoped, tag = 'input window, operand 0, single buffered']
    #allocation3 [shape = 's32[1]{0}', space=sflag, size = 0x4, scoped, tag = 'scoped memory for tpu_custom_call.1']
    #allocation4 [shape = 's32[1]{0}', space=sflag, size = 0x4, scoped, tag = 'scoped memory for tpu_custom_call.1']
    #allocation5 [shape = 'u8[81920]{0}', space=vmem, size = 0x14000, scoped, tag = 'input window, operand 1, single buffered']
    #allocation6 [shape = 's32[1]{0}', space=sflag, size = 0x4, scoped, tag = 'scoped memory for tpu_custom_call.1']
    #allocation7 [shape = 'u8[2048]{0}', space=vmem, size = 0x800, scoped, tag = 'input window, operand 2, single buffered']
    #allocation8 [shape = 'u8[16384]{0}', space=vmem, size = 0x4000, scoped, tag = 'output window, operand 0, single buffered']
    %8 = vsyncpa [#allocation3], 0
    %9 = vsyncpa [#allocation6], 0
    %10 = vsyncpa [#allocation4], 0
    // Predicated region
    $region2: #{tpu_custom_call.1} parent=1 // pred_check
      _
    $region3: #{tpu_custom_call.1} parent=1 // pred_check_branch
      %12 = sbr.rel (0) target = $region5
    $region4: #{tpu_custom_call.1} parent=1 // pred_region
      %s14 = ssub.s32 128, 128
      %15 = vsyncadd [#allocation3], %s14
      %s17 = sshll.u32 [#allocation2], 4
      %s18 = int_to_ptr.vmem [resolvable:$true] %s17
      %20 = dma.hbm_to_vmem [thread:$0]  %s0, 128, %s18, [#allocation3]
    $region5: #{tpu_custom_call.1} parent=1 // pred_fallthru
      _
    // Predicated region
    $region6: #{tpu_custom_call.1} parent=1 // pred_check
      _
    $region7: #{tpu_custom_call.1} parent=1 // pred_check_branch
      %22 = sbr.rel (0) target = $region9
    $region8: #{tpu_custom_call.1} parent=1 // pred_region
      %s24 = ssub.s32 2560, 2560
      %25 = vsyncadd [#allocation6], %s24
      %s26 = sshll.u32 [#allocation5], 4
      %s27 = int_to_ptr.vmem [resolvable:$true] %s26
      %32 = dma.hbm_to_vmem [thread:$0]  %s1, 2560, %s27, [#allocation6], 256, 256, 16
    $region9: #{tpu_custom_call.1} parent=1 // pred_fallthru
      _
    // Predicated region
    $region10: #{tpu_custom_call.1} parent=1 // pred_check
      _
    $region11: #{tpu_custom_call.1} parent=1 // pred_check_branch
      %34 = sbr.rel (0) target = $region13
    $region12: #{tpu_custom_call.1} parent=1 // pred_region
      %s36 = ssub.s32 64, 64
      %37 = vsyncadd [#allocation6], %s36
      %s39 = sshll.u32 [#allocation7], 4
      %s40 = int_to_ptr.vmem [resolvable:$true] %s39
      %42 = dma.hbm_to_vmem [thread:$0]  %s2, 64, %s40, [#allocation6]
    $region13: #{tpu_custom_call.1} parent=1 // pred_fallthru
      _
    // Predicated region
    $region14: #{tpu_custom_call.1} parent=1 // pred_check
      _
    $region15: #{tpu_custom_call.1} parent=1 // pred_check_branch
      %44 = sbr.rel (0) target = $region17
    $region16: #{tpu_custom_call.1} parent=1 // pred_region
      %45 = dma.done [#allocation3], 128
    $region17: #{tpu_custom_call.1} parent=1 // pred_fallthru
      _
    // Predicated region
    $region18: #{tpu_custom_call.1} parent=1 // pred_check
      _
    $region19: #{tpu_custom_call.1} parent=1 // pred_check_branch
      %47 = sbr.rel (0) target = $region21
    $region20: #{tpu_custom_call.1} parent=1 // pred_region
      %48 = dma.done [#allocation6], 2560
    $region21: #{tpu_custom_call.1} parent=1 // pred_fallthru
      _
    // Predicated region
    $region22: #{tpu_custom_call.1} parent=1 // pred_check
      _
    $region23: #{tpu_custom_call.1} parent=1 // pred_check_branch
      %50 = sbr.rel (0) target = $region25
    $region24: #{tpu_custom_call.1} parent=1 // pred_region
      %51 = dma.done [#allocation6], 64
    $region25: #{tpu_custom_call.1} parent=1 // pred_fallthru
      _
    %v53 = vld [vmem:[#allocation2] sm:$0xff]
    %v54 = vpack.c.bf16 %v53, %v53
    %v55 = vld [vmem:[#allocation5] sm:$0xff]
    %v56 = vld [vmem:[#allocation5 + $0x8] sm:$0xff]
    %v57 = vld [vmem:[#allocation5 + $0x10] sm:$0xff]
    %v58 = vld [vmem:[#allocation5 + $0x18] sm:$0xff]
    %v59 = vld [vmem:[#allocation5 + $0x20] sm:$0xff]
    %v60 = vld [vmem:[#allocation5 + $0x28] sm:$0xff]
    %v61 = vld [vmem:[#allocation5 + $0x30] sm:$0xff]
    %v62 = vld [vmem:[#allocation5 + $0x38] sm:$0xff]
    %v63 = vld [vmem:[#allocation5 + $0x40] sm:$0xff]
    %v64 = vld [vmem:[#allocation5 + $0x48] sm:$0xff]
    %v65 = vld [vmem:[#allocation5 + $0x50] sm:$0xff]
    %v66 = vld [vmem:[#allocation5 + $0x58] sm:$0xff]
    %v67 = vld [vmem:[#allocation5 + $0x60] sm:$0xff]
    %v68 = vld [vmem:[#allocation5 + $0x68] sm:$0xff]
    %v69 = vld [vmem:[#allocation5 + $0x70] sm:$0xff]
    %v70 = vld [vmem:[#allocation5 + $0x78] sm:$0xff]
    %v71 = vld [vmem:[#allocation5 + $0x80] sm:$0xff]
    %v72 = vld [vmem:[#allocation5 + $0x88] sm:$0xff]
    %v73 = vld [vmem:[#allocation5 + $0x90] sm:$0x77]
    %v74 = vld [vmem:[#allocation5 + $0x98] sm:$0x77]
    %v75 = vld [vmem:[#allocation7] sm:$0xf]
    %v77 = vlaneseq
    %v78 = vshrl.u32 %v77, 7
    %v79 = vsub.s32 0, %v78
    %v80 = vrot.slane %v75, %v79
    %v81 = vlaneseq
    %v82 = vshrl.u32 %v81, 7
    %v83 = vsub.s32 1, %v82
    %v84 = vrot.slane %v75, %v83
    %v85 = vlaneseq
    %v86 = vshrl.u32 %v85, 7
    %v87 = vsub.s32 2, %v86
    %v88 = vrot.slane %v75, %v87
    %v89 = vlaneseq
    %v90 = vshrl.u32 %v89, 7
    %v91 = vsub.s32 3, %v90
    %v92 = vrot.slane %v75, %v91
    %v117 = vunpack.c.l.b16 %v55
    %v118 = vunpack.c.h.b16 %v55
    %v119 = vunpack.c.l.b16 %v56
    %v120 = vunpack.c.h.b16 %v56
    %v121 = vunpack.c.l.b16 %v57
    %v122 = vunpack.c.h.b16 %v57
    %v123 = vunpack.c.l.b16 %v58
    %v124 = vunpack.c.h.b16 %v58
    %v125 = vunpack.c.l.b16 %v59
    %v126 = vunpack.c.h.b16 %v59
    %v127 = vunpack.c.l.b16 %v60
    %v128 = vunpack.c.h.b16 %v60
    %v129 = vunpack.c.l.b16 %v61
    %v130 = vunpack.c.h.b16 %v61
    %v131 = vunpack.c.l.b16 %v62
    %v132 = vunpack.c.h.b16 %v62
    %v133 = vunpack.c.l.b16 %v63
    %v134 = vunpack.c.h.b16 %v63
    %v135 = vunpack.c.l.b16 %v64
    %v136 = vunpack.c.h.b16 %v64
    %v137 = vunpack.c.l.b16 %v65
    %v138 = vunpack.c.h.b16 %v65
    %v139 = vunpack.c.l.b16 %v66
    %v140 = vunpack.c.h.b16 %v66
    %v141 = vunpack.c.l.b16 %v67
    %v142 = vunpack.c.h.b16 %v67
    %v143 = vunpack.c.l.b16 %v68
    %v144 = vunpack.c.h.b16 %v68
    %v145 = vunpack.c.l.b16 %v69
    %v146 = vunpack.c.h.b16 %v69
    %v147 = vunpack.c.l.b16 %v70
    %v148 = vunpack.c.h.b16 %v70
    %v149 = vunpack.c.l.b16 %v71
    %v150 = vunpack.c.h.b16 %v71
    %v151 = vunpack.c.l.b16 %v72
    %v152 = vunpack.c.h.b16 %v72
    %v153 = vunpack.c.l.b16 %v73
    %v154 = vunpack.c.h.b16 %v73
    %v155 = vunpack.c.l.b16 %v74
    %v156 = vunpack.c.h.b16 %v74
    %v157 = vpack.c.b16 %v121, %v117
    %v158 = vpack.c.b16 %v122, %v118
    %v159 = vpack.c.b16 %v123, %v119
    %v160 = vpack.c.b16 %v124, %v120
    %v161 = vpack.c.b16 %v129, %v125
    %v162 = vpack.c.b16 %v130, %v126
    %v163 = vpack.c.b16 %v131, %v127
    %v164 = vpack.c.b16 %v132, %v128
    %v165 = vpack.c.b16 %v137, %v133
    %v166 = vpack.c.b16 %v138, %v134
    %v167 = vpack.c.b16 %v139, %v135
    %v168 = vpack.c.b16 %v140, %v136
    %v169 = vpack.c.b16 %v145, %v141
    %v170 = vpack.c.b16 %v146, %v142
    %v171 = vpack.c.b16 %v147, %v143
    %v172 = vpack.c.b16 %v148, %v144
    %v173 = vpack.c.b16 %v153, %v149
    %v174 = vpack.c.b16 %v154, %v150
    %v175 = vpack.c.b16 %v155, %v151
    %v176 = vpack.c.b16 %v156, %v152
    %vm193 = vcmask 629760
    %v195 = vsel %vm193, %v54, 0
    %vm197 = vcmask 1045504
    %vm198 = vcmask 1046528
    %v199 = vsel %vm197, 4294967295, 65535
    %v200 = vsel %vm198, %v199, 0
    %v202 = vand.u32 %v173, %v200
    %v205 = vand.u32 %v174, %v200
    %v208 = vand.u32 %v175, %v200
    %v211 = vand.u32 %v176, %v200
    %213 = vmatprep.subr.bf16.mxu0 0
    %214 = vmatpush1.bf16.msra.mxu0 0
    %215 = vmatprep.subr.bf16.mxu0 0
    %216 = vmatpush1.bf16.msra.mxu0 0
    %217 = vmatprep.subr.bf16.mxu0 0
    %218 = vmatpush1.bf16.msra.mxu0 0
    %219 = vmatprep.subr.bf16.mxu0 %v205
    %220 = vmatpush1.bf16.msra.mxu0 %v202
    %221 = vmatprep.subr.bf16.mxu0 %v170
    %222 = vmatpush1.bf16.msra.mxu0 %v169
    %223 = vmatprep.subr.bf16.mxu0 %v166
    %224 = vmatpush1.bf16.msra.mxu0 %v165
    %225 = vmatprep.subr.bf16.mxu0 %v162
    %226 = vmatpush1.bf16.msra.mxu0 %v161
    %227 = vmatprep.subr.bf16.mxu0 %v158
    %228 = vmatpush1.bf16.msra.mxu0 %v157
    %229 = vmatprep.subr.bf16.mxu0 0
    %230 = vmatpush2.bf16.msra.mxu0 0
    %231 = vmatprep.subr.bf16.mxu0 0
    %232 = vmatpush2.bf16.msra.mxu0 0
    %233 = vmatprep.subr.bf16.mxu0 0
    %234 = vmatpush2.bf16.msra.mxu0 0
    %235 = vmatprep.subr.bf16.mxu0 0
    %236 = vmatpush2.bf16.msra.mxu0 0
    %237 = vmatprep.subr.bf16.mxu0 0
    %238 = vmatpush2.bf16.msra.mxu0 0
    %239 = vmatprep.subr.bf16.mxu0 0
    %240 = vmatpush2.bf16.msra.mxu0 0
    %241 = vmatprep.subr.bf16.mxu0 0
    %242 = vmatpush2.bf16.msra.mxu0 0
    %243 = vmatprep.subr.bf16.mxu0 0
    %244 = vmatpush2.bf16.msra.mxu0 0
    %245 = vmatprep.mubr.bf16.mxu0 0
    %246 = vmatmul.mubr.bf16.gmra.mxu0 %v195
    %v247 = vpop.f32.mrf.mxu0
    %v248 = vadd.f32 %v80, %v247
    %v249 = vpop.f32.mrf.mxu0
    %v250 = vadd.f32 %v84, %v249
    %v251 = vpop.f32.mrf.mxu0
    %v252 = vpop.f32.mrf.mxu0
    %253 = vdwg.mxu0
    %254 = vmatprep.subr.bf16.mxu0 0
    %255 = vmatpush1.bf16.msra.mxu0 0
    %256 = vmatprep.subr.bf16.mxu0 0
    %257 = vmatpush1.bf16.msra.mxu0 0
    %258 = vmatprep.subr.bf16.mxu0 0
    %259 = vmatpush1.bf16.msra.mxu0 0
    %260 = vmatprep.subr.bf16.mxu0 %v211
    %261 = vmatpush1.bf16.msra.mxu0 %v208
    %262 = vmatprep.subr.bf16.mxu0 %v172
    %263 = vmatpush1.bf16.msra.mxu0 %v171
    %264 = vmatprep.subr.bf16.mxu0 %v168
    %265 = vmatpush1.bf16.msra.mxu0 %v167
    %266 = vmatprep.subr.bf16.mxu0 %v164
    %267 = vmatpush1.bf16.msra.mxu0 %v163
    %268 = vmatprep.subr.bf16.mxu0 %v160
    %269 = vmatpush1.bf16.msra.mxu0 %v159
    %270 = vmatprep.subr.bf16.mxu0 0
    %271 = vmatpush2.bf16.msra.mxu0 0
    %272 = vmatprep.subr.bf16.mxu0 0
    %273 = vmatpush2.bf16.msra.mxu0 0
    %274 = vmatprep.subr.bf16.mxu0 0
    %275 = vmatpush2.bf16.msra.mxu0 0
    %276 = vmatprep.subr.bf16.mxu0 0
    %277 = vmatpush2.bf16.msra.mxu0 0
    %278 = vmatprep.subr.bf16.mxu0 0
    %279 = vmatpush2.bf16.msra.mxu0 0
    %280 = vmatprep.subr.bf16.mxu0 0
    %281 = vmatpush2.bf16.msra.mxu0 0
    %282 = vmatprep.subr.bf16.mxu0 0
    %283 = vmatpush2.bf16.msra.mxu0 0
    %284 = vmatprep.subr.bf16.mxu0 0
    %285 = vmatpush2.bf16.msra.mxu0 0
    %286 = vmatprep.mubr.bf16.mxu0 0
    %287 = vmatmul.mubr.bf16.gmra.mxu0 %v195
    %v288 = vpop.f32.mrf.mxu0
    %v289 = vadd.f32 %v88, %v288
    %v290 = vpop.f32.mrf.mxu0
    %v291 = vadd.f32 %v92, %v290
    %v292 = vpop.f32.mrf.mxu0
    %v293 = vpop.f32.mrf.mxu0
    %294 = vdwg.mxu0
    %v295 = vsub.f32 0.0, %v248
    %v296 = vsub.f32 0.0, %v250
    %v297 = vsub.f32 0.0, %v289
    %v298 = vsub.f32 0.0, %v291
    %v299 = vmul.f32 %v295, 1.442695
    %v300 = vpow.pop %v299
    %v301 = vmul.f32 %v296, 1.442695
    %v302 = vpow.pop %v301
    %v303 = vmul.f32 %v297, 1.442695
    %v304 = vpow.pop %v303
    %v305 = vmul.f32 %v298, 1.442695
    %v306 = vpow.pop %v305
    %v307 = vadd.f32 %v300, 1.0
    %v308 = vadd.f32 %v302, 1.0
    %v309 = vadd.f32 %v304, 1.0
    %v310 = vadd.f32 %v306, 1.0
    %v311 = vrcp.pop %v307
    %v312 = vrcp.pop %v308
    %v313 = vrcp.pop %v309
    %v314 = vrcp.pop %v310
    %315 = vst [vmem:[#allocation8] sm:$0xff] %v311
    %316 = vst [vmem:[#allocation8 + $0x8] sm:$0xff] %v312
    %317 = vst [vmem:[#allocation8 + $0x10] sm:$0xff] %v313
    %318 = vst [vmem:[#allocation8 + $0x18] sm:$0xff] %v314
    // Predicated region
    $region26: #{tpu_custom_call.1} parent=1 // pred_check
      _
    $region27: #{tpu_custom_call.1} parent=1 // pred_check_branch
      %320 = sbr.rel (0) target = $region29
    $region28: #{tpu_custom_call.1} parent=1 // pred_region
      %s322 = ssub.s32 512, 512
      %323 = vsyncadd [#allocation4], %s322
      %s325 = sshll.u32 [#allocation8], 4
      %s326 = int_to_ptr.vmem [resolvable:$true] %s325
      %328 = dma.vmem_to_hbm [thread:$0]  %s326, 512, %s3, [#allocation4]
    $region29: #{tpu_custom_call.1} parent=1 // pred_fallthru
      _
    // Predicated region
    $region30: #{tpu_custom_call.1} parent=1 // pred_check
      _
    $region31: #{tpu_custom_call.1} parent=1 // pred_check_branch
      %330 = sbr.rel (0) target = $region33
    $region32: #{tpu_custom_call.1} parent=1 // pred_region
      %331 = dma.done [#allocation4], 512
    $region33: #{tpu_custom_call.1} parent=1 // pred_fallthru
      _
    %332 = vsyncpa [#allocation3], 1
    %333 = vsyncpa [#allocation6], 1
    %334 = vsyncpa [#allocation4], 1

</llo_original>
